<compile_context>
chip_gen: v7x
topology: tpu7x:2x2x1
jax: 0.10.0
libtpu: 0.0.40
codegen_flags: <defaults>
</compile_context>

<pallas_src>
import jax
import jax.numpy as jnp
from jax.experimental import pallas as pl
from jax.experimental.pallas import tpu as pltpu

SUB = 8        # f32 sublane tile
LANE = 128     # lane tile
UNROLL = 8     # timesteps processed per grid step in the sequence kernel


def _round_up(n, m):
    return ((n + m - 1) // m) * m


def _pad2(a, rows, cols):
    r, c = a.shape
    return jnp.zeros((rows, cols), jnp.float32).at[:r, :c].set(a.astype(jnp.float32))


# ----------------------------------------------------------------------------
# Single-timestep kernel (matches the torch forward exactly, f32 throughout).
# ----------------------------------------------------------------------------
def rnn_cell_kernel(x_ref, h_prev_ref, w_xh_ref, w_hh_ref, w_hy_ref,
                    b_h_ref, b_o_ref, out_ref, h_new_ref):
    # Read h_prev BEFORE writing h_new (h_prev/h_new share a buffer via aliasing).
    pre = (jnp.dot(h_prev_ref[...], w_hh_ref[...],
                   preferred_element_type=jnp.float32)
           + jnp.dot(x_ref[...], w_xh_ref[...],
                     preferred_element_type=jnp.float32)
           + b_h_ref[...])                       # (1, Hp) broadcasts over SUB rows
    h_new = jnp.tanh(pre)
    h_new_ref[...] = h_new
    out_ref[...] = (jnp.dot(h_new, w_hy_ref[...],
                            preferred_element_type=jnp.float32)
                    + b_o_ref[...])


def prepare_cell_params(params):
    """Pad/layout the weights once; reuse across every single-step call."""
    W_xh, W_hh, W_hy = params["W_xh"], params["W_hh"], params["W_hy"]
    b_h, b_o = params["bias_hidden"], params["bias_output"]
    D_in, H = W_xh.shape
    D_out = W_hy.shape[1]
    Dp, Hp, Op = (_round_up(D_in, LANE), _round_up(H, LANE), _round_up(D_out, LANE))
    return {
        "dims": (D_in, H, D_out, Dp, Hp, Op),
        "W_xh": _pad2(W_xh, Dp, Hp),
        "W_hh": _pad2(W_hh, Hp, Hp),
        "W_hy": _pad2(W_hy, Hp, Op),
        "b_h": jnp.zeros((1, Hp), jnp.float32).at[0, :H].set(b_h.astype(jnp.float32)),
        "b_o": jnp.zeros((1, Op), jnp.float32).at[0, :D_out].set(b_o.astype(jnp.float32)),
    }


def naive_rnn_forward(x, params, prev_hidden_state=None, padded=None):
    """x: (input_dim,). Returns (output (output_dim,), new_hidden (H,))."""
    if padded is None:
        padded = prepare_cell_params(params)
    D_in, H, D_out, Dp, Hp, Op = padded["dims"]
    if prev_hidden_state is None:
        prev_hidden_state = jnp.zeros((H,), dtype=jnp.float32)

    # Sublane-padded row vectors (row 0 valid).
    # TODO(synk): if a batch dimension ever exists, put it in this sublane/M
    # axis instead of padding 7 dead rows.
    x2 = jnp.zeros((SUB, Dp), jnp.float32).at[0, :D_in].set(x.astype(jnp.float32))
    h2 = jnp.zeros((SUB, Hp), jnp.float32).at[0, :H].set(
        prev_hidden_state.astype(jnp.float32))

    vmem = pl.BlockSpec(memory_space=pltpu.MemorySpace.VMEM)
    out_p, h_new_p = pl.pallas_call(
        rnn_cell_kernel,
        out_shape=(
            jax.ShapeDtypeStruct((SUB, Op), jnp.float32),
            jax.ShapeDtypeStruct((SUB, Hp), jnp.float32),
        ),
        in_specs=[vmem] * 7,
        out_specs=(vmem, vmem),
        input_output_aliases={1: 1},   # h_prev buffer reused for h_new
    )(x2, h2, padded["W_xh"], padded["W_hh"], padded["W_hy"],
      padded["b_h"], padded["b_o"])

    return out_p[0, :D_out], h_new_p[0, :H]


# ----------------------------------------------------------------------------
# Fused sequence kernel: U=8 timesteps per grid step, W_hh resident in VMEM,
# hidden state carried in a VMEM scratch across grid steps. Both the input
# projection (x_t @ W_xh + b_h) and the output projection (h_t @ W_hy + b_o)
# are hoisted out of the serial recurrence into batched XLA matmuls.
# ----------------------------------------------------------------------------
def rnn_seq_kernel(xp_ref, h0_ref, w_hh_ref, h_hist_ref, h_carry):
    # xp_ref:     (U, Hp)  precomputed x_t @ W_xh + b_h  (streamed, sublane-dense)
    # h0_ref:     (1, Hp)  initial hidden state          (resident)
    # w_hh_ref:   (Hp, Hp) recurrence weights            (resident, f32 or bf16)
    # h_hist_ref: (U, Hp)  hidden-state history chunk    (written, sublane-dense)
    # h_carry:    (1, Hp)  f32 scratch carried across grid steps
    @pl.when(pl.program_id(0) == 0)
    def _():
        h_carry[...] = h0_ref[...]

    u = xp_ref.shape[0]
    w_hh = w_hh_ref[...]                 # load resident weights once per chunk
    h = h_carry[...]                     # (1, Hp) f32 carried hidden state
    for i in range(u):                   # static unroll: U timesteps per grid step
        pre = (jnp.dot(h.astype(w_hh.dtype), w_hh,
                       preferred_element_type=jnp.float32)
               + xp_ref[pl.ds(i, 1), :])
        h = jnp.tanh(pre)                # f32 tanh / carry
        h_hist_ref[pl.ds(i, 1), :] = h   # fills sublane i of the dense out block
    h_carry[...] = h


def naive_rnn_sequence(xs, params, prev_hidden_state=None,
                       mxu_dtype=jnp.bfloat16):
    """xs: (T, input_dim). Returns (outputs (T, output_dim), final hidden (H,)).

    mxu_dtype controls the operand precision of the in-loop h @ W_hh matmul
    (accumulation and everything else stays f32). jnp.float32 reproduces the
    torch module bit-for-bit (up to tanh rounding); jnp.bfloat16 halves the
    resident-weight VMEM and MXU work on all TPU generations.
    """
    W_xh, W_hh, W_hy = params["W_xh"], params["W_hh"], params["W_hy"]
    b_h, b_o = params["bias_hidden"], params["bias_output"]
    T = xs.shape[0]
    D_in, H = W_xh.shape
    if prev_hidden_state is None:
        prev_hidden_state = jnp.zeros((H,), dtype=jnp.float32)

    Hp = _round_up(H, LANE)
    U = UNROLL
    T_pad = _round_up(max(T, 1), U)
    n_chunks = T_pad // U

    # Hoisted input projection: one batched matmul, no serial dependence.
    xp = xs.astype(jnp.float32) @ W_xh.astype(jnp.float32) + b_h.astype(jnp.float32)
    xp_pad = jnp.zeros((T_pad, Hp), jnp.float32).at[:T, :H].set(xp)  # sublane-dense

    h0 = jnp.zeros((1, Hp), jnp.float32).at[0, :H].set(
        prev_hidden_state.astype(jnp.float32))
    Whh_p = _pad2(W_hh, Hp, Hp).astype(mxu_dtype)

    # Explicit VMEM budget: resident W_hh + double-buffered xp / h-history streams.
    # TODO(synk): for very large H (Hp^2 * itemsize approaching the scoped VMEM
    # limit, ~32 MiB default / 64 MiB physical on v7x) tile W_hh over an inner
    # K loop (pltpu.emit_pipeline) instead of holding it whole.
    whh_bytes = Hp * Hp * jnp.dtype(mxu_dtype).itemsize
    stream_bytes = 4 * U * Hp * 4                   # xp in + h_hist out, x2 buffers
    vmem_limit = int(min(100 * 2**20,
                         max(8 * 2**20, 2 * whh_bytes + stream_bytes + (2 << 20))))

    grid_spec = pltpu.PrefetchScalarGridSpec(
        num_scalar_prefetch=0,
        grid=(n_chunks,),
        in_specs=[
            pl.BlockSpec((U, Hp), lambda c: (c, 0)),     # xp chunk, streamed
            pl.BlockSpec((1, Hp), lambda c: (0, 0)),     # h0, resident
            pl.BlockSpec((Hp, Hp), lambda c: (0, 0)),    # W_hh, resident
        ],
        out_specs=pl.BlockSpec((U, Hp), lambda c: (c, 0)),  # hidden-history chunk
        scratch_shapes=[pltpu.VMEM((1, Hp), jnp.float32)],  # carried hidden state
    )

    h_hist_p = pl.pallas_call(
        rnn_seq_kernel,
        out_shape=jax.ShapeDtypeStruct((T_pad, Hp), jnp.float32),
        grid_spec=grid_spec,
        compiler_params=pltpu.CompilerParams(
            dimension_semantics=("arbitrary",),   # serial recurrence over time
            vmem_limit_bytes=vmem_limit),
    )(xp_pad, h0, Whh_p)

    h_hist = h_hist_p[:T, :H]
    # Hoisted output projection: one batched (T, H) @ (H, O) matmul in plain XLA
    # (off the serial path; uses the full MXU M dimension and both TCs on v7x).
    outs = h_hist @ W_hy.astype(jnp.float32) + b_o.astype(jnp.float32)
    return outs, h_hist[T - 1]


# ----------------------------------------------------------------------------
# Params + pure-JAX references.
# ----------------------------------------------------------------------------
def init_params(key, no_of_rnn_cells, input_dim, output_dim):
    k1, k2, k3, k4, k5 = jax.random.split(key, 5)
    return {
        "W_xh": jax.random.normal(k1, (input_dim, no_of_rnn_cells), jnp.float32),
        "W_hh": jax.random.normal(k2, (no_of_rnn_cells, no_of_rnn_cells), jnp.float32),
        "W_hy": jax.random.normal(k3, (no_of_rnn_cells, output_dim), jnp.float32),
        "bias_hidden": jax.random.normal(k4, (no_of_rnn_cells,), jnp.float32),
        "bias_output": jax.random.normal(k5, (output_dim,), jnp.float32),
    }


def naive_rnn_reference(x, params, prev_hidden_state=None):
    """Exact torch-module semantics, single step, f32."""
    H = params["W_hh"].shape[0]
    if prev_hidden_state is None:
        prev_hidden_state = jnp.zeros((H,), dtype=jnp.float32)
    h = jnp.tanh(prev_hidden_state @ params["W_hh"]
                 + x @ params["W_xh"] + params["bias_hidden"])
    out = h @ params["W_hy"] + params["bias_output"]
    return out, h


def naive_rnn_sequence_reference(xs, params, prev_hidden_state=None,
                                 mxu_dtype=jnp.float32):
    """Sequence reference. mxu_dtype=float32 is exact torch semantics; bfloat16
    applies the same recurrence-weight quantization as the bf16 kernel path."""
    H = params["W_hh"].shape[0]
    h = (prev_hidden_state if prev_hidden_state is not None
         else jnp.zeros((H,), jnp.float32))
    xp = (xs.astype(jnp.float32) @ params["W_xh"].astype(jnp.float32)
          + params["bias_hidden"].astype(jnp.float32))
    W_hh_c = params["W_hh"].astype(mxu_dtype)
    hs = []
    for t in range(xs.shape[0]):
        pre = jnp.dot(h.astype(mxu_dtype), W_hh_c,
                      preferred_element_type=jnp.float32) + xp[t]
        h = jnp.tanh(pre)
        hs.append(h)
    h_hist = jnp.stack(hs)
    outs = h_hist @ params["W_hy"].astype(jnp.float32) + params["bias_output"]
    return outs, h


if __name__ == "__main__":
    no_of_rnn_cells = 32   # hidden size
    input_dim = 16
    output_dim = 8
    seq_len = 12           # not a multiple of 8: exercises chunking + tail padding

    key = jax.random.PRNGKey(0)
    pkey, xkey, hkey, skey = jax.random.split(key, 4)
    params = init_params(pkey, no_of_rnn_cells, input_dim, output_dim)

    x = jax.random.normal(xkey, (input_dim,), jnp.float32)
    h_prev = jax.random.normal(hkey, (no_of_rnn_cells,), jnp.float32)
    xs = jax.random.normal(skey, (seq_len, input_dim), jnp.float32)

    padded = prepare_cell_params(params)   # pad / layout the weights once

    # Case 1: single step, explicit previous hidden state.
    out, h_new = naive_rnn_forward(x, params, h_prev, padded=padded)
    jax.block_until_ready(out); jax.block_until_ready(h_new)

    # Case 2: single step, prev_hidden_state=None (zeros init).
    out0, h_new0 = naive_rnn_forward(x, params, None, padded=padded)
    jax.block_until_ready(out0); jax.block_until_ready(h_new0)

    # Case 3: fused sequence, exact f32 MXU operands.
    outs_f32, hT_f32 = naive_rnn_sequence(xs, params, h_prev, mxu_dtype=jnp.float32)
    jax.block_until_ready(outs_f32); jax.block_until_ready(hT_f32)

    # Case 4: fused sequence, bf16 MXU operands (recommended for large H).
    outs_b16, hT_b16 = naive_rnn_sequence(xs, params, h_prev, mxu_dtype=jnp.bfloat16)
    jax.block_until_ready(outs_b16); jax.block_until_ready(hT_b16)

    # References.
    ref_out, ref_h = naive_rnn_reference(x, params, h_prev)
    ref_out0, ref_h0 = naive_rnn_reference(x, params, None)
    ref_outs_f32, ref_hT_f32 = naive_rnn_sequence_reference(
        xs, params, h_prev, mxu_dtype=jnp.float32)
    ref_outs_b16, ref_hT_b16 = naive_rnn_sequence_reference(
        xs, params, h_prev, mxu_dtype=jnp.bfloat16)

    assert jnp.allclose(out, ref_out, atol=1e-4, rtol=1e-4)
    assert jnp.allclose(h_new, ref_h, atol=1e-4, rtol=1e-4)
    assert jnp.allclose(out0, ref_out0, atol=1e-4, rtol=1e-4)
    assert jnp.allclose(h_new0, ref_h0, atol=1e-4, rtol=1e-4)
    # Sequence checks: tolerances allow for tanh rounding drift over the
    # recurrence; bf16 path is compared against a reference that applies the
    # same recurrence-weight quantization.
    assert jnp.allclose(outs_f32, ref_outs_f32, atol=1e-2, rtol=1e-2)
    assert jnp.allclose(hT_f32, ref_hT_f32, atol=1e-2, rtol=1e-2)
    assert jnp.allclose(outs_b16, ref_outs_b16, atol=1e-2, rtol=1e-2)
    assert jnp.allclose(hT_b16, ref_hT_b16, atol=1e-2, rtol=1e-2)

    print("KERNEL_OK")
</pallas_src>

<mosaic_0001>
module attributes {stable_mosaic.version = 11 : i64} {
  func.func @rnn_cell_kernel(%arg0: memref<8x128xf32, #tpu.memory_space<vmem>>, %arg1: memref<8x128xf32, #tpu.memory_space<vmem>>, %arg2: memref<128x128xf32, #tpu.memory_space<vmem>>, %arg3: memref<128x128xf32, #tpu.memory_space<vmem>>, %arg4: memref<128x128xf32, #tpu.memory_space<vmem>>, %arg5: memref<1x128xf32, #tpu.memory_space<vmem>>, %arg6: memref<1x128xf32, #tpu.memory_space<vmem>>, %arg7: memref<8x128xf32, #tpu.memory_space<vmem>>, %arg8: memref<8x128xf32, #tpu.memory_space<vmem>>) attributes {dimension_semantics = [], scalar_prefetch = 0 : i64, scratch_operands = 0 : i64, tpu.core_type = #tpu.core_type<tc>} {
    %c0 = arith.constant 0 : index
    %c0_0 = arith.constant 0 : index
    %0 = vector.load %arg1[%c0, %c0_0] : memref<8x128xf32, #tpu.memory_space<vmem>>, vector<8x128xf32>
    %c0_1 = arith.constant 0 : index
    %c0_2 = arith.constant 0 : index
    %1 = vector.load %arg3[%c0_1, %c0_2] : memref<128x128xf32, #tpu.memory_space<vmem>>, vector<128x128xf32>
    %cst = arith.constant dense<0.000000e+00> : vector<8x128xf32>
    %2 = tpu.matmul %0, %1, %cst {dimension_numbers = #tpu.dot_dimension_numbers<[1], [0], [0], [1], [0, 0, 1, 1], [], []>} : vector<8x128xf32>, vector<128x128xf32>, vector<8x128xf32> -> vector<8x128xf32>
    %c0_3 = arith.constant 0 : index
    %c0_4 = arith.constant 0 : index
    %3 = vector.load %arg0[%c0_3, %c0_4] : memref<8x128xf32, #tpu.memory_space<vmem>>, vector<8x128xf32>
    %c0_5 = arith.constant 0 : index
    %c0_6 = arith.constant 0 : index
    %4 = vector.load %arg2[%c0_5, %c0_6] : memref<128x128xf32, #tpu.memory_space<vmem>>, vector<128x128xf32>
    %cst_7 = arith.constant dense<0.000000e+00> : vector<8x128xf32>
    %5 = tpu.matmul %3, %4, %cst_7 {dimension_numbers = #tpu.dot_dimension_numbers<[1], [0], [0], [1], [0, 0, 1, 1], [], []>} : vector<8x128xf32>, vector<128x128xf32>, vector<8x128xf32> -> vector<8x128xf32>
    %6 = arith.addf %2, %5 : vector<8x128xf32>
    %c0_8 = arith.constant 0 : index
    %c0_9 = arith.constant 0 : index
    %7 = vector.load %arg5[%c0_8, %c0_9] : memref<1x128xf32, #tpu.memory_space<vmem>>, vector<1x128xf32>
    %8 = vector.broadcast %7 : vector<1x128xf32> to vector<8x128xf32>
    %9 = arith.addf %6, %8 : vector<8x128xf32>
    %10 = math.tanh %9 : vector<8x128xf32>
    %c0_10 = arith.constant 0 : index
    %c0_11 = arith.constant 0 : index
    %11 = vector.load %arg8[%c0_10, %c0_11] : memref<8x128xf32, #tpu.memory_space<vmem>>, vector<8x128xf32>
    tpu.vector_store %arg8[%c0_10, %c0_11], %10 {strides = array<i32>} : memref<8x128xf32, #tpu.memory_space<vmem>>, vector<8x128xf32>,
    %c0_12 = arith.constant 0 : index
    %c0_13 = arith.constant 0 : index
    %12 = vector.load %arg4[%c0_12, %c0_13] : memref<128x128xf32, #tpu.memory_space<vmem>>, vector<128x128xf32>
    %cst_14 = arith.constant dense<0.000000e+00> : vector<8x128xf32>
    %13 = tpu.matmul %10, %12, %cst_14 {dimension_numbers = #tpu.dot_dimension_numbers<[1], [0], [0], [1], [0, 0, 1, 1], [], []>} : vector<8x128xf32>, vector<128x128xf32>, vector<8x128xf32> -> vector<8x128xf32>
    %c0_15 = arith.constant 0 : index
    %c0_16 = arith.constant 0 : index
    %14 = vector.load %arg6[%c0_15, %c0_16] : memref<1x128xf32, #tpu.memory_space<vmem>>, vector<1x128xf32>
    %15 = vector.broadcast %14 : vector<1x128xf32> to vector<8x128xf32>
    %16 = arith.addf %13, %15 : vector<8x128xf32>
    %c0_17 = arith.constant 0 : index
    %c0_18 = arith.constant 0 : index
    %17 = vector.load %arg7[%c0_17, %c0_18] : memref<8x128xf32, #tpu.memory_space<vmem>>, vector<8x128xf32>
    tpu.vector_store %arg7[%c0_17, %c0_18], %16 {strides = array<i32>} : memref<8x128xf32, #tpu.memory_space<vmem>>, vector<8x128xf32>,
    return
  }
}

</mosaic_0001>

<llo_original>
// kernel: tpu_custom_call.1
$region0: #{tpu_custom_call.1}
  #allocation0 [shape = 'u32[]', space=smem, size = 0x4, offset = 0x4, fixed_abs, tag = 'smem constant byte address 0x4 - core index']
  #allocation1 [shape = 'u32[144,128]{1,0:T(1,128)}', space=vmem, size = 0x12000, scoped, tag = 'internal scratch']
  %s0 = inlined_call_operand.vmem [shape: f32[8,128], index: 0, kind: input, shape index: {}]
  %s1 = inlined_call_operand.hbm [shape: f32[8,128], index: 1, kind: input, shape index: {}, may-alias: {1,8}]
  %s2 = inlined_call_operand.hbm [shape: f32[128,128], index: 2, kind: input, shape index: {}]
  %s3 = inlined_call_operand.hbm [shape: f32[128,128], index: 3, kind: input, shape index: {}]
  %s4 = inlined_call_operand.hbm [shape: f32[128,128], index: 4, kind: input, shape index: {}]
  %s5 = inlined_call_operand.vmem [shape: f32[1,128], index: 5, kind: input, shape index: {}]
  %s6 = inlined_call_operand.vmem [shape: f32[1,128], index: 6, kind: input, shape index: {}]
  %s7 = inlined_call_operand.hbm [shape: f32[8,128], index: 7, kind: output, shape index: {0}]
  %s8 = inlined_call_operand.hbm [shape: f32[8,128], index: 8, kind: output, shape index: {1}, may-alias: {1,8}]
  %9 = xla_tuple %s7, %s8
  %s10 = sld [smem:[#allocation0]]
  $region62: #{tpu_custom_call.1} parent=0
    _
  %s12 = ssub.s32 1, %s10
  %s13 = scalar_select 0, %s12, %s10
  $region1: #{tpu_custom_call.1} parent=0
    #allocation2 [shape = 'u8[4096]{0}', space=vmem, size = 0x1000, scoped, tag = 'input window, operand 1, single buffered']
    #allocation3 [shape = 's32[1]{0}', space=sflag, size = 0x4, scoped, tag = 'scoped memory for tpu_custom_call.1']
    #allocation4 [shape = 's32[1]{0}', space=sflag, size = 0x4, scoped, tag = 'scoped memory for tpu_custom_call.1']
    #allocation5 [shape = 'u8[65536]{0}', space=vmem, size = 0x10000, scoped, tag = 'input window, operand 2, single buffered']
    #allocation6 [shape = 's32[1]{0}', space=sflag, size = 0x4, scoped, tag = 'scoped memory for tpu_custom_call.1']
    #allocation7 [shape = 'u8[65536]{0}', space=vmem, size = 0x10000, scoped, tag = 'input window, operand 3, single buffered']
    #allocation8 [shape = 'u8[65536]{0}', space=vmem, size = 0x10000, scoped, tag = 'input window, operand 4, single buffered']
    #allocation9 [shape = 's32[1]{0}', space=sflag, size = 0x4, scoped, tag = 'scoped memory for tpu_custom_call.1']
    #allocation10 [shape = 'u8[4096]{0}', space=vmem, size = 0x1000, scoped, tag = 'output window, operand 0, single buffered']
    #allocation11 [shape = 'u8[4096]{0}', space=vmem, size = 0x1000, scoped, tag = 'output window, operand 1, single buffered']
    #allocation12 [shape = 's32[1]{0}', space=sflag, size = 0x4, scoped, tag = 'scoped memory for tpu_custom_call.1']
    %14 = vsyncpa [#allocation3], 0
    %15 = vsyncpa [#allocation6], 0
    %16 = vsyncpa [#allocation9], 0
    %17 = vsyncpa [#allocation4], 0
    %18 = vsyncpa [#allocation12], 0
    // Predicated region
    $region2: #{tpu_custom_call.1} parent=1 // pred_check
      _
    $region3: #{tpu_custom_call.1} parent=1 // pred_check_branch
      %20 = sbr.rel (0) target = $region5
    $region4: #{tpu_custom_call.1} parent=1 // pred_region
      _
    $region5: #{tpu_custom_call.1} parent=1 // pred_fallthru
      _
    // Predicated region
    $region6: #{tpu_custom_call.1} parent=1 // pred_check
      _
    $region7: #{tpu_custom_call.1} parent=1 // pred_check_branch
      %22 = sbr.rel (0) target = $region9
    $region8: #{tpu_custom_call.1} parent=1 // pred_region
      %s24 = ssub.s32 128, 128
      %25 = vsyncadd [#allocation3], %s24
      %s27 = sshll.u32 [#allocation2], 4
      %s28 = int_to_ptr.vmem [resolvable:$true] %s27
      %30 = dma.hbm_to_vmem [thread:$0]  %s1, 128, %s28, [#allocation3]
    $region9: #{tpu_custom_call.1} parent=1 // pred_fallthru
      _
    // Predicated region
    $region10: #{tpu_custom_call.1} parent=1 // pred_check
      _
    $region11: #{tpu_custom_call.1} parent=1 // pred_check_branch
      %32 = sbr.rel (0) target = $region13
    $region12: #{tpu_custom_call.1} parent=1 // pred_region
      %s34 = ssub.s32 2048, 2048
      %35 = vsyncadd [#allocation6], %s34
      %s36 = sshll.u32 [#allocation5], 4
      %s37 = int_to_ptr.vmem [resolvable:$true] %s36
      %42 = dma.hbm_to_vmem [thread:$0]  %s2, 2048, %s37, [#allocation6], 128, 128, 8
    $region13: #{tpu_custom_call.1} parent=1 // pred_fallthru
      _
    // Predicated region
    $region14: #{tpu_custom_call.1} parent=1 // pred_check
      _
    $region15: #{tpu_custom_call.1} parent=1 // pred_check_branch
      %44 = sbr.rel (0) target = $region17
    $region16: #{tpu_custom_call.1} parent=1 // pred_region
      %s46 = ssub.s32 2048, 2048
      %47 = vsyncadd [#allocation6], %s46
      %s48 = sshll.u32 [#allocation7], 4
      %s49 = int_to_ptr.vmem [resolvable:$true] %s48
      %54 = dma.hbm_to_vmem [thread:$0]  %s3, 2048, %s49, [#allocation6], 128, 128, 8
    $region17: #{tpu_custom_call.1} parent=1 // pred_fallthru
      _
    // Predicated region
    $region18: #{tpu_custom_call.1} parent=1 // pred_check
      _
    $region19: #{tpu_custom_call.1} parent=1 // pred_check_branch
      %56 = sbr.rel (0) target = $region21
    $region20: #{tpu_custom_call.1} parent=1 // pred_region
      %s58 = ssub.s32 2048, 2048
      %59 = vsyncadd [#allocation9], %s58
      %s60 = sshll.u32 [#allocation8], 4
      %s61 = int_to_ptr.vmem [resolvable:$true] %s60
      %66 = dma.hbm_to_vmem [thread:$0]  %s4, 2048, %s61, [#allocation9], 128, 128, 8
    $region21: #{tpu_custom_call.1} parent=1 // pred_fallthru
      _
    // Predicated region
    $region22: #{tpu_custom_call.1} parent=1 // pred_check
      _
    $region23: #{tpu_custom_call.1} parent=1 // pred_check_branch
      %68 = sbr.rel (0) target = $region25
    $region24: #{tpu_custom_call.1} parent=1 // pred_region
      _
    $region25: #{tpu_custom_call.1} parent=1 // pred_fallthru
      _
    // Predicated region
    $region26: #{tpu_custom_call.1} parent=1 // pred_check
      _
    $region27: #{tpu_custom_call.1} parent=1 // pred_check_branch
      %70 = sbr.rel (0) target = $region29
    $region28: #{tpu_custom_call.1} parent=1 // pred_region
      _
    $region29: #{tpu_custom_call.1} parent=1 // pred_fallthru
      _
    // Predicated region
    $region30: #{tpu_custom_call.1} parent=1 // pred_check
      _
    $region31: #{tpu_custom_call.1} parent=1 // pred_check_branch
      %72 = sbr.rel (0) target = $region33
    $region32: #{tpu_custom_call.1} parent=1 // pred_region
      %73 = dma.done [#allocation3], 128
    $region33: #{tpu_custom_call.1} parent=1 // pred_fallthru
      _
    // Predicated region
    $region34: #{tpu_custom_call.1} parent=1 // pred_check
      _
    $region35: #{tpu_custom_call.1} parent=1 // pred_check_branch
      %75 = sbr.rel (0) target = $region37
    $region36: #{tpu_custom_call.1} parent=1 // pred_region
      %76 = dma.done [#allocation6], 2048
    $region37: #{tpu_custom_call.1} parent=1 // pred_fallthru
      _
    // Predicated region
    $region38: #{tpu_custom_call.1} parent=1 // pred_check
      _
    $region39: #{tpu_custom_call.1} parent=1 // pred_check_branch
      %78 = sbr.rel (0) target = $region41
    $region40: #{tpu_custom_call.1} parent=1 // pred_region
      %79 = dma.done [#allocation6], 2048
    $region41: #{tpu_custom_call.1} parent=1 // pred_fallthru
      _
    // Predicated region
    $region42: #{tpu_custom_call.1} parent=1 // pred_check
      _
    $region43: #{tpu_custom_call.1} parent=1 // pred_check_branch
      %81 = sbr.rel (0) target = $region45
    $region44: #{tpu_custom_call.1} parent=1 // pred_region
      %82 = dma.done [#allocation9], 2048
    $region45: #{tpu_custom_call.1} parent=1 // pred_fallthru
      _
    %v83 = vld [vmem:[#allocation2] sm:$0xff]
    %v84 = vld [vmem:[#allocation7] sm:$0xff]
    %v85 = vld [vmem:[#allocation7 + $0x8] sm:$0xff]
    %v86 = vld [vmem:[#allocation7 + $0x10] sm:$0xff]
    %v87 = vld [vmem:[#allocation7 + $0x18] sm:$0xff]
    %v88 = vld [vmem:[#allocation7 + $0x20] sm:$0xff]
    %v89 = vld [vmem:[#allocation7 + $0x28] sm:$0xff]
    %v90 = vld [vmem:[#allocation7 + $0x30] sm:$0xff]
    %v91 = vld [vmem:[#allocation7 + $0x38] sm:$0xff]
    %v92 = vld [vmem:[#allocation7 + $0x40] sm:$0xff]
    %v93 = vld [vmem:[#allocation7 + $0x48] sm:$0xff]
    %v94 = vld [vmem:[#allocation7 + $0x50] sm:$0xff]
    %v95 = vld [vmem:[#allocation7 + $0x58] sm:$0xff]
    %v96 = vld [vmem:[#allocation7 + $0x60] sm:$0xff]
    %v97 = vld [vmem:[#allocation7 + $0x68] sm:$0xff]
    %v98 = vld [vmem:[#allocation7 + $0x70] sm:$0xff]
    %v99 = vld [vmem:[#allocation7 + $0x78] sm:$0xff]
    %v100 = vld [vmem:[%s0] sm:$0xff]
    %v101 = vld [vmem:[#allocation5] sm:$0xff]
    %v102 = vld [vmem:[#allocation5 + $0x8] sm:$0xff]
    %v103 = vld [vmem:[#allocation5 + $0x10] sm:$0xff]
    %v104 = vld [vmem:[#allocation5 + $0x18] sm:$0xff]
    %v105 = vld [vmem:[#allocation5 + $0x20] sm:$0xff]
    %v106 = vld [vmem:[#allocation5 + $0x28] sm:$0xff]
    %v107 = vld [vmem:[#allocation5 + $0x30] sm:$0xff]
    %v108 = vld [vmem:[#allocation5 + $0x38] sm:$0xff]
    %v109 = vld [vmem:[#allocation5 + $0x40] sm:$0xff]
    %v110 = vld [vmem:[#allocation5 + $0x48] sm:$0xff]
    %v111 = vld [vmem:[#allocation5 + $0x50] sm:$0xff]
    %v112 = vld [vmem:[#allocation5 + $0x58] sm:$0xff]
    %v113 = vld [vmem:[#allocation5 + $0x60] sm:$0xff]
    %v114 = vld [vmem:[#allocation5 + $0x68] sm:$0xff]
    %v115 = vld [vmem:[#allocation5 + $0x70] sm:$0xff]
    %v116 = vld [vmem:[#allocation5 + $0x78] sm:$0xff]
    %117 = vmatprep.subr.mxu0 0.0
    %118 = vmatpush1.msra.mxu0 %v101
    %119 = vmatprep.subr.mxu0 0.0
    %120 = vmatpush1.msra.mxu0 %v102
    %121 = vmatprep.subr.mxu0 0.0
    %122 = vmatpush1.msra.mxu0 %v103
    %123 = vmatprep.subr.mxu0 0.0
    %124 = vmatpush1.msra.mxu0 %v104
    %125 = vmatprep.subr.mxu0 0.0
    %126 = vmatpush1.msra.mxu0 %v105
    %127 = vmatprep.subr.mxu0 0.0
    %128 = vmatpush1.msra.mxu0 %v106
    %129 = vmatprep.subr.mxu0 0.0
    %130 = vmatpush1.msra.mxu0 %v107
    %131 = vmatprep.subr.mxu0 0.0
    %132 = vmatpush1.msra.mxu0 %v108
    %133 = vmatprep.subr.mxu0 0.0
    %134 = vmatpush1.msra.mxu0 %v109
    %135 = vmatprep.subr.mxu0 0.0
    %136 = vmatpush1.msra.mxu0 %v110
    %137 = vmatprep.subr.mxu0 0.0
    %138 = vmatpush1.msra.mxu0 %v111
    %139 = vmatprep.subr.mxu0 0.0
    %140 = vmatpush1.msra.mxu0 %v112
    %141 = vmatprep.subr.mxu0 0.0
    %142 = vmatpush1.msra.mxu0 %v113
    %143 = vmatprep.subr.mxu0 0.0
    %144 = vmatpush1.msra.mxu0 %v114
    %145 = vmatprep.subr.mxu0 0.0
    %146 = vmatpush1.msra.mxu0 %v115
    %147 = vmatprep.subr.mxu0 0.0
    %148 = vmatpush1.msra.mxu0 %v116
    %149 = vmatprep.subr.mxu0 0.0
    %150 = vmatpush1.msra.mxu0 0.0
    %151 = vmatprep.subr.mxu0 0.0
    %152 = vmatpush1.msra.mxu0 0.0
    %153 = vmatprep.subr.mxu0 0.0
    %154 = vmatpush1.msra.mxu0 0.0
    %155 = vmatprep.subr.mxu0 0.0
    %156 = vmatpush1.msra.mxu0 0.0
    %157 = vmatprep.subr.mxu0 0.0
    %158 = vmatpush1.msra.mxu0 0.0
    %159 = vmatprep.subr.mxu0 0.0
    %160 = vmatpush1.msra.mxu0 0.0
    %161 = vmatprep.subr.mxu0 0.0
    %162 = vmatpush1.msra.mxu0 0.0
    %163 = vmatprep.subr.mxu0 0.0
    %164 = vmatpush1.msra.mxu0 0.0
    %165 = vmatprep.subr.mxu0 0.0
    %166 = vmatpush1.msra.mxu0 0.0
    %167 = vmatprep.subr.mxu0 0.0
    %168 = vmatpush1.msra.mxu0 0.0
    %169 = vmatprep.subr.mxu0 0.0
    %170 = vmatpush1.msra.mxu0 0.0
    %171 = vmatprep.subr.mxu0 0.0
    %172 = vmatpush1.msra.mxu0 0.0
    %173 = vmatprep.subr.mxu0 0.0
    %174 = vmatpush1.msra.mxu0 0.0
    %175 = vmatprep.subr.mxu0 0.0
    %176 = vmatpush1.msra.mxu0 0.0
    %177 = vmatprep.subr.mxu0 0.0
    %178 = vmatpush1.msra.mxu0 0.0
    %179 = vmatprep.subr.mxu0 0.0
    %180 = vmatpush1.msra.mxu0 0.0
    %181 = vmatprep.mubr.f32.mxu0 0.0
    %182 = vmatmul.mubr.f32.gmra.mrb[0].mxu0 %v100
    %v183 = vpop.f32.mrb[0].mxu0
    %v184 = vadd.f32 0.0, %v183
    %v185 = vpop.f32.mrb[0].mxu0
    %186 = vdwg.mxu0
    %187 = vmatprep.subr.mxu0 0.0
    %188 = vmatpush1.msra.mxu0 %v84
    %189 = vmatprep.subr.mxu0 0.0
    %190 = vmatpush1.msra.mxu0 %v85
    %191 = vmatprep.subr.mxu0 0.0
    %192 = vmatpush1.msra.mxu0 %v86
    %193 = vmatprep.subr.mxu0 0.0
    %194 = vmatpush1.msra.mxu0 %v87
    %195 = vmatprep.subr.mxu0 0.0
    %196 = vmatpush1.msra.mxu0 %v88
    %197 = vmatprep.subr.mxu0 0.0
    %198 = vmatpush1.msra.mxu0 %v89
    %199 = vmatprep.subr.mxu0 0.0
    %200 = vmatpush1.msra.mxu0 %v90
    %201 = vmatprep.subr.mxu0 0.0
    %202 = vmatpush1.msra.mxu0 %v91
    %203 = vmatprep.subr.mxu0 0.0
    %204 = vmatpush1.msra.mxu0 %v92
    %205 = vmatprep.subr.mxu0 0.0
    %206 = vmatpush1.msra.mxu0 %v93
    %207 = vmatprep.subr.mxu0 0.0
    %208 = vmatpush1.msra.mxu0 %v94
    %209 = vmatprep.subr.mxu0 0.0
    %210 = vmatpush1.msra.mxu0 %v95
    %211 = vmatprep.subr.mxu0 0.0
    %212 = vmatpush1.msra.mxu0 %v96
    %213 = vmatprep.subr.mxu0 0.0
    %214 = vmatpush1.msra.mxu0 %v97
    %215 = vmatprep.subr.mxu0 0.0
    %216 = vmatpush1.msra.mxu0 %v98
    %217 = vmatprep.subr.mxu0 0.0
    %218 = vmatpush1.msra.mxu0 %v99
    %219 = vmatprep.subr.mxu0 0.0
    %220 = vmatpush1.msra.mxu0 0.0
    %221 = vmatprep.subr.mxu0 0.0
    %222 = vmatpush1.msra.mxu0 0.0
    %223 = vmatprep.subr.mxu0 0.0
    %224 = vmatpush1.msra.mxu0 0.0
    %225 = vmatprep.subr.mxu0 0.0
    %226 = vmatpush1.msra.mxu0 0.0
    %227 = vmatprep.subr.mxu0 0.0
    %228 = vmatpush1.msra.mxu0 0.0
    %229 = vmatprep.subr.mxu0 0.0
    %230 = vmatpush1.msra.mxu0 0.0
    %231 = vmatprep.subr.mxu0 0.0
    %232 = vmatpush1.msra.mxu0 0.0
    %233 = vmatprep.subr.mxu0 0.0
    %234 = vmatpush1.msra.mxu0 0.0
    %235 = vmatprep.subr.mxu0 0.0
    %236 = vmatpush1.msra.mxu0 0.0
    %237 = vmatprep.subr.mxu0 0.0
    %238 = vmatpush1.msra.mxu0 0.0
    %239 = vmatprep.subr.mxu0 0.0
    %240 = vmatpush1.msra.mxu0 0.0
    %241 = vmatprep.subr.mxu0 0.0
    %242 = vmatpush1.msra.mxu0 0.0
    %243 = vmatprep.subr.mxu0 0.0
    %244 = vmatpush1.msra.mxu0 0.0
    %245 = vmatprep.subr.mxu0 0.0
    %246 = vmatpush1.msra.mxu0 0.0
    %247 = vmatprep.subr.mxu0 0.0
    %248 = vmatpush1.msra.mxu0 0.0
    %249 = vmatprep.subr.mxu0 0.0
    %250 = vmatpush1.msra.mxu0 0.0
    %251 = vmatprep.mubr.f32.mxu0 0.0
    %252 = vmatmul.mubr.f32.gmra.mrb[0].mxu0 %v83
    %v253 = vpop.f32.mrb[0].mxu0
    %v254 = vadd.f32 %v184, %v253
    %v255 = vpop.f32.mrb[0].mxu0
    %256 = vdwg.mxu0
    %v257 = vld [vmem:[%s5] sm:$0x1]
    %v259 = vlaneseq
    %v260 = vshrl.u32 %v259, 7
    %v261 = vsub.s32 0, %v260
    %v262 = vrot.slane %v257, %v261
    %v264 = vadd.f32 %v254, %v262
    %v265 = vtanh.pop %v264
    %266 = vst [vmem:[#allocation11] sm:$0xff] %v265
    %v267 = vld [vmem:[#allocation8] sm:$0xff]
    %v268 = vld [vmem:[#allocation8 + $0x8] sm:$0xff]
    %v269 = vld [vmem:[#allocation8 + $0x10] sm:$0xff]
    %v270 = vld [vmem:[#allocation8 + $0x18] sm:$0xff]
    %v271 = vld [vmem:[#allocation8 + $0x20] sm:$0xff]
    %v272 = vld [vmem:[#allocation8 + $0x28] sm:$0xff]
    %v273 = vld [vmem:[#allocation8 + $0x30] sm:$0xff]
    %v274 = vld [vmem:[#allocation8 + $0x38] sm:$0xff]
    %v275 = vld [vmem:[#allocation8 + $0x40] sm:$0xff]
    %v276 = vld [vmem:[#allocation8 + $0x48] sm:$0xff]
    %v277 = vld [vmem:[#allocation8 + $0x50] sm:$0xff]
    %v278 = vld [vmem:[#allocation8 + $0x58] sm:$0xff]
    %v279 = vld [vmem:[#allocation8 + $0x60] sm:$0xff]
    %v280 = vld [vmem:[#allocation8 + $0x68] sm:$0xff]
    %v281 = vld [vmem:[#allocation8 + $0x70] sm:$0xff]
    %v282 = vld [vmem:[#allocation8 + $0x78] sm:$0xff]
    %v283 = vld [vmem:[%s6] sm:$0x1]
    %v285 = vlaneseq
    %v286 = vshrl.u32 %v285, 7
    %v287 = vsub.s32 0, %v286
    %v288 = vrot.slane %v283, %v287
    %290 = vmatprep.subr.mxu0 0.0
    %291 = vmatpush1.msra.mxu0 %v267
    %292 = vmatprep.subr.mxu0 0.0
    %293 = vmatpush1.msra.mxu0 %v268
    %294 = vmatprep.subr.mxu0 0.0
    %295 = vmatpush1.msra.mxu0 %v269
    %296 = vmatprep.subr.mxu0 0.0
    %297 = vmatpush1.msra.mxu0 %v270
    %298 = vmatprep.subr.mxu0 0.0
    %299 = vmatpush1.msra.mxu0 %v271
    %300 = vmatprep.subr.mxu0 0.0
    %301 = vmatpush1.msra.mxu0 %v272
    %302 = vmatprep.subr.mxu0 0.0
    %303 = vmatpush1.msra.mxu0 %v273
    %304 = vmatprep.subr.mxu0 0.0
    %305 = vmatpush1.msra.mxu0 %v274
    %306 = vmatprep.subr.mxu0 0.0
    %307 = vmatpush1.msra.mxu0 %v275
    %308 = vmatprep.subr.mxu0 0.0
    %309 = vmatpush1.msra.mxu0 %v276
    %310 = vmatprep.subr.mxu0 0.0
    %311 = vmatpush1.msra.mxu0 %v277
    %312 = vmatprep.subr.mxu0 0.0
    %313 = vmatpush1.msra.mxu0 %v278
    %314 = vmatprep.subr.mxu0 0.0
    %315 = vmatpush1.msra.mxu0 %v279
    %316 = vmatprep.subr.mxu0 0.0
    %317 = vmatpush1.msra.mxu0 %v280
    %318 = vmatprep.subr.mxu0 0.0
    %319 = vmatpush1.msra.mxu0 %v281
    %320 = vmatprep.subr.mxu0 0.0
    %321 = vmatpush1.msra.mxu0 %v282
    %322 = vmatprep.subr.mxu0 0.0
    %323 = vmatpush1.msra.mxu0 0.0
    %324 = vmatprep.subr.mxu0 0.0
    %325 = vmatpush1.msra.mxu0 0.0
    %326 = vmatprep.subr.mxu0 0.0
    %327 = vmatpush1.msra.mxu0 0.0
    %328 = vmatprep.subr.mxu0 0.0
    %329 = vmatpush1.msra.mxu0 0.0
    %330 = vmatprep.subr.mxu0 0.0
    %331 = vmatpush1.msra.mxu0 0.0
    %332 = vmatprep.subr.mxu0 0.0
    %333 = vmatpush1.msra.mxu0 0.0
    %334 = vmatprep.subr.mxu0 0.0
    %335 = vmatpush1.msra.mxu0 0.0
    %336 = vmatprep.subr.mxu0 0.0
    %337 = vmatpush1.msra.mxu0 0.0
    %338 = vmatprep.subr.mxu0 0.0
    %339 = vmatpush1.msra.mxu0 0.0
    %340 = vmatprep.subr.mxu0 0.0
    %341 = vmatpush1.msra.mxu0 0.0
    %342 = vmatprep.subr.mxu0 0.0
    %343 = vmatpush1.msra.mxu0 0.0
    %344 = vmatprep.subr.mxu0 0.0
    %345 = vmatpush1.msra.mxu0 0.0
    %346 = vmatprep.subr.mxu0 0.0
    %347 = vmatpush1.msra.mxu0 0.0
    %348 = vmatprep.subr.mxu0 0.0
    %349 = vmatpush1.msra.mxu0 0.0
    %350 = vmatprep.subr.mxu0 0.0
    %351 = vmatpush1.msra.mxu0 0.0
    %352 = vmatprep.subr.mxu0 0.0
    %353 = vmatpush1.msra.mxu0 0.0
    %354 = vmatprep.mubr.f32.mxu0 0.0
    %355 = vmatmul.mubr.f32.gmra.mrb[0].mxu0 %v265
    %v356 = vpop.f32.mrb[0].mxu0
    %v357 = vadd.f32 %v288, %v356
    %v358 = vpop.f32.mrb[0].mxu0
    %359 = vdwg.mxu0
    %360 = vst [vmem:[#allocation10] sm:$0xff] %v357
    // Predicated region
    $region46: #{tpu_custom_call.1} parent=1 // pred_check
      _
    $region47: #{tpu_custom_call.1} parent=1 // pred_check_branch
      %362 = sbr.rel (0) target = $region49
    $region48: #{tpu_custom_call.1} parent=1 // pred_region
      %s364 = ssub.s32 128, 128
      %365 = vsyncadd [#allocation4], %s364
      %s367 = sshll.u32 [#allocation10], 4
      %s368 = int_to_ptr.vmem [resolvable:$true] %s367
      %370 = dma.vmem_to_hbm [thread:$0]  %s368, 128, %s7, [#allocation4]
    $region49: #{tpu_custom_call.1} parent=1 // pred_fallthru
      _
    // Predicated region
    $region50: #{tpu_custom_call.1} parent=1 // pred_check
      _
    $region51: #{tpu_custom_call.1} parent=1 // pred_check_branch
      %372 = sbr.rel (0) target = $region53
    $region52: #{tpu_custom_call.1} parent=1 // pred_region
      %s374 = ssub.s32 128, 128
      %375 = vsyncadd [#allocation12], %s374
      %s377 = sshll.u32 [#allocation11], 4
      %s378 = int_to_ptr.vmem [resolvable:$true] %s377
      %380 = dma.vmem_to_hbm [thread:$0]  %s378, 128, %s8, [#allocation12]
    $region53: #{tpu_custom_call.1} parent=1 // pred_fallthru
      _
    // Predicated region
    $region54: #{tpu_custom_call.1} parent=1 // pred_check
      _
    $region55: #{tpu_custom_call.1} parent=1 // pred_check_branch
      %382 = sbr.rel (0) target = $region57
    $region56: #{tpu_custom_call.1} parent=1 // pred_region
      %383 = dma.done [#allocation4], 128
    $region57: #{tpu_custom_call.1} parent=1 // pred_fallthru
      _
    // Predicated region
    $region58: #{tpu_custom_call.1} parent=1 // pred_check
      _
    $region59: #{tpu_custom_call.1} parent=1 // pred_check_branch
      %385 = sbr.rel (0) target = $region61
    $region60: #{tpu_custom_call.1} parent=1 // pred_region
      %386 = dma.done [#allocation12], 128
    $region61: #{tpu_custom_call.1} parent=1 // pred_fallthru
      _
    %387 = vsyncpa [#allocation3], 1
    %388 = vsyncpa [#allocation6], 1
    %389 = vsyncpa [#allocation9], 1
    %390 = vsyncpa [#allocation4], 1
    %391 = vsyncpa [#allocation12], 1

</llo_original>
